<compile_context>
chip_gen: v7x
topology: tpu7x:2x2x1
jax: 0.10.0
libtpu: 0.0.40
codegen_flags: <defaults>
</compile_context>

<pallas_src>
import jax
import jax.numpy as jnp
from jax.experimental import pallas as pl
from jax.experimental.pallas import tpu as pltpu

# ---- model hyper-parameters (deterministic, in-script) ----------------------
NUM_STEPS = 8
BETA = 0.9
THRESHOLD = 1.0

B, C, H_IMG, W_IMG = 2, 4, 16, 16           # input images, NCHW
D_IN = C * H_IMG * W_IMG                    # 1024
D_HID = 128
D_OUT = 16
D_OUT_PAD = 128                             # lane-dense fc2 / output width

MAX_TILE_B = 1024   # per-tile VMEM at 1024: ~2 MiB x (bf16) + 2 MiB spikes + <5 MiB misc
GRANULE = 16        # batch-row granule (safe sublane packing for f32 and bf16)
VMEM_LIMIT_BYTES = 48 * 1024 * 1024


def _round_up(v, m):
    return -(-v // m) * m


def snn_attack_kernel(x_ref, w1_ref, b1_ref, w2_ref, b2_ref, out_ref, spk1_ref):
    """SNN forward + sum-over-time for one batch tile.

    x_ref   : (TB, D_IN)        f32/bf16   flattened input tile
    w1_ref  : (D_IN, D_HID)     f32/bf16
    b1_ref  : (1, D_HID)        f32
    w2_ref  : (D_HID, D_OUT_PAD) f32/bf16  (zero-padded columns)
    b2_ref  : (1, D_OUT_PAD)    f32        (zero-padded columns)
    out_ref : (TB, D_OUT_PAD)   f32        spike counts summed over time
    spk1_ref: (NUM_STEPS*TB, D_HID) scratch, same dtype as x/w1 (spikes exact)
    """
    tb = x_ref.shape[0]
    spk_dtype = spk1_ref.dtype

    # fc1(x) is identical every time step (static rate-coded input) -> 1 MXU matmul.
    cur1 = jnp.dot(x_ref[...], w1_ref[...],
                   preferred_element_type=jnp.float32) + b1_ref[...]

    # ---- layer-1 LIF, fully unrolled; spikes stream into the VMEM scratch ---
    mem1 = jnp.zeros((tb, D_HID), jnp.float32)
    for t in range(NUM_STEPS):
        mem1 = BETA * mem1 + cur1
        fired1 = mem1 > THRESHOLD
        spk1_ref[pl.ds(t * tb, tb), :] = fired1.astype(spk_dtype)
        mem1 = jnp.where(fired1, mem1 - THRESHOLD, mem1)   # THRESHOLD == 1.0

    # ---- fc2 hoisted out of the time loop: ONE (NUM_STEPS*TB, D_HID) matmul -
    cur2_all = jnp.dot(spk1_ref[...], w2_ref[...],
                       preferred_element_type=jnp.float32) + b2_ref[...]

    # ---- layer-2 LIF + online sum over time, fully unrolled (VPU only) ------
    mem2 = jnp.zeros((tb, D_OUT_PAD), jnp.float32)
    acc = jnp.zeros((tb, D_OUT_PAD), jnp.float32)
    for t in range(NUM_STEPS):
        cur2 = cur2_all[t * tb:(t + 1) * tb, :]            # static, aligned rows
        mem2 = BETA * mem2 + cur2
        fired2 = mem2 > THRESHOLD
        mem2 = jnp.where(fired2, mem2 - THRESHOLD, mem2)
        acc = acc + fired2.astype(jnp.float32)

    out_ref[...] = acc


def attack_wrapper_forward(x_nchw, w1, b1, w2, b2, *, tile_b=None,
                           compute_dtype=jnp.bfloat16):
    """x_nchw: (N, C, H, W) -> (N, D_OUT) f32 spike counts (AttackWrapper.forward).

    compute_dtype controls the matmul-operand / spike-scratch dtype only;
    LIF state and outputs are always f32.  float32 is bit-exact vs reference;
    bfloat16 (default) is the fast attack-surrogate path.
    """
    n = x_nchw.shape[0]
    x_flat = x_nchw.reshape(n, -1).astype(compute_dtype)   # x.view(x.size(0), -1)
    w1c = w1.astype(compute_dtype)
    b1c = b1.astype(jnp.float32)

    # Pad fc2 to a lane-dense 128-wide output (extra columns are all-zero ->
    # their membranes never cross threshold -> zero counts, sliced off below).
    w2p = jnp.zeros((D_HID, D_OUT_PAD), jnp.float32).at[:, :D_OUT].set(
        w2.astype(jnp.float32)).astype(compute_dtype)
    b2p = jnp.zeros((1, D_OUT_PAD), jnp.float32).at[:, :D_OUT].set(
        b2.astype(jnp.float32))

    # Batch tiling: pad to the row granule; pick a tile that (a) is as large as
    # allowed and (b) yields >=2 grid steps when possible (v7x megacore).
    padded_n = _round_up(max(n, GRANULE), GRANULE)
    if tile_b is None:
        if padded_n >= 2 * GRANULE:
            tile_b = min(MAX_TILE_B, _round_up(-(-padded_n // 2), GRANULE))
        else:
            tile_b = padded_n
    else:
        tile_b = _round_up(tile_b, GRANULE)
    padded_n = _round_up(padded_n, tile_b)
    if padded_n != n:
        x_flat = jnp.pad(x_flat, ((0, padded_n - n), (0, 0)))

    out = pl.pallas_call(
        snn_attack_kernel,
        out_shape=jax.ShapeDtypeStruct((padded_n, D_OUT_PAD), jnp.float32),
        grid=(padded_n // tile_b,),
        in_specs=[
            pl.BlockSpec((tile_b, D_IN), lambda i: (i, 0)),
            pl.BlockSpec((D_IN, D_HID), lambda i: (0, 0)),      # VMEM-resident
            pl.BlockSpec((1, D_HID), lambda i: (0, 0)),
            pl.BlockSpec((D_HID, D_OUT_PAD), lambda i: (0, 0)),
            pl.BlockSpec((1, D_OUT_PAD), lambda i: (0, 0)),
        ],
        out_specs=pl.BlockSpec((tile_b, D_OUT_PAD), lambda i: (i, 0)),
        scratch_shapes=[pltpu.VMEM((NUM_STEPS * tile_b, D_HID), compute_dtype)],
        compiler_params=pltpu.CompilerParams(
            dimension_semantics=("parallel",),        # batch axis -> megacore
            vmem_limit_bytes=VMEM_LIMIT_BYTES),       # v5e default is only 16 MiB
    )(x_flat, w1c, b1c, w2p, b2p)
    return out[:n, :D_OUT]


def reference_forward(x_nchw, w1, b1, w2, b2):
    """Pure-JAX f32 reference of the same SNN for correctness checks."""
    x = x_nchw.reshape(x_nchw.shape[0], -1)
    cur1 = x @ w1 + b1
    mem1 = jnp.zeros((x.shape[0], D_HID), jnp.float32)
    mem2 = jnp.zeros((x.shape[0], D_OUT), jnp.float32)
    acc = jnp.zeros((x.shape[0], D_OUT), jnp.float32)
    for _ in range(NUM_STEPS):
        mem1 = BETA * mem1 + cur1
        spk1 = (mem1 > THRESHOLD).astype(jnp.float32)
        mem1 = mem1 - spk1 * THRESHOLD
        cur2 = spk1 @ w2 + b2
        mem2 = BETA * mem2 + cur2
        spk2 = (mem2 > THRESHOLD).astype(jnp.float32)
        mem2 = mem2 - spk2 * THRESHOLD
        acc = acc + spk2
    return acc


if __name__ == "__main__":
    key = jax.random.PRNGKey(0)
    kx, k1, k2, k3, k4, kx2 = jax.random.split(key, 6)

    x = jax.random.normal(kx, (B, C, H_IMG, W_IMG), jnp.float32)
    # deterministic synthetic parameters (Linear weights, (in, out) layout)
    w1 = jax.random.normal(k1, (D_IN, D_HID), jnp.float32) * (1.0 / jnp.sqrt(D_IN))
    b1 = jax.random.normal(k2, (1, D_HID), jnp.float32) * 0.1
    w2 = jax.random.normal(k3, (D_HID, D_OUT), jnp.float32) * (1.0 / jnp.sqrt(D_HID))
    b2 = jax.random.normal(k4, (1, D_OUT), jnp.float32) * 0.1

    ref = reference_forward(x, w1, b1, w2, b2)

    # --- exact-parity check in f32 compute mode ------------------------------
    out_f32 = jax.block_until_ready(
        attack_wrapper_forward(x, w1, b1, w2, b2, compute_dtype=jnp.float32))
    assert out_f32.shape == (B, D_OUT), out_f32.shape
    assert jnp.allclose(out_f32, ref, atol=1e-5), "f32 mismatch vs reference"

    # --- default bf16 fast path: spike counts are integers in [0, NUM_STEPS];
    #     bf16 rounding can flip individual spikes near threshold, so use a
    #     count-aware (loose) tolerance rather than atol=1e-5.
    out_bf16 = jax.block_until_ready(attack_wrapper_forward(x, w1, b1, w2, b2))
    assert out_bf16.shape == (B, D_OUT), out_bf16.shape
    assert bool(jnp.all(jnp.isfinite(out_bf16)))
    assert float(jnp.mean(jnp.abs(out_bf16 - ref))) <= 1.0, "bf16 counts far off"

    # --- exercise the batch-tiled grid path (grid > 1, with padding) --------
    n2 = 18
    x2 = jax.random.normal(kx2, (n2, C, H_IMG, W_IMG), jnp.float32)
    out_tiled = jax.block_until_ready(
        attack_wrapper_forward(x2, w1, b1, w2, b2, tile_b=16,
                               compute_dtype=jnp.float32))   # grid=(2,)
    ref2 = reference_forward(x2, w1, b1, w2, b2)
    assert out_tiled.shape == (n2, D_OUT), out_tiled.shape
    assert jnp.allclose(out_tiled, ref2, atol=1e-5), "batch-tiling mismatch"

    # TODO(synk): hard threshold (mem > thr) has zero gradient; the PGD backward
    # pass needs a surrogate-gradient custom_vjp (forward only here).
    print("KERNEL_OK")
</pallas_src>

<mosaic_0001>
module attributes {stable_mosaic.version = 11 : i64} {
  func.func @snn_attack_kernel(%arg0: i32, %arg1: memref<16x1024xf32, #tpu.memory_space<vmem>>, %arg2: memref<1024x128xf32, #tpu.memory_space<vmem>>, %arg3: memref<1x128xf32, #tpu.memory_space<vmem>>, %arg4: memref<128x128xf32, #tpu.memory_space<vmem>>, %arg5: memref<1x128xf32, #tpu.memory_space<vmem>>, %arg6: memref<16x128xf32, #tpu.memory_space<vmem>>, %arg7: memref<128x128xf32, #tpu.memory_space<vmem>>) attributes {dimension_semantics = [#tpu.dimension_semantics<parallel>], iteration_bounds = array<i64: 1>, scalar_prefetch = 0 : i64, scratch_operands = 1 : i64, tpu.core_type = #tpu.core_type<tc>, window_params = [{transform_indices = @transform_0, window_bounds = array<i64: 16, 1024>}, {pipeline_mode = #tpu.pipeline_mode<synchronous>, transform_indices = @transform_1, window_bounds = array<i64: 1024, 128>}, {pipeline_mode = #tpu.pipeline_mode<synchronous>, transform_indices = @transform_2, window_bounds = array<i64: 1, 128>}, {pipeline_mode = #tpu.pipeline_mode<synchronous>, transform_indices = @transform_3, window_bounds = array<i64: 128, 128>}, {pipeline_mode = #tpu.pipeline_mode<synchronous>, transform_indices = @transform_4, window_bounds = array<i64: 1, 128>}, {transform_indices = @transform_5, window_bounds = array<i64: 16, 128>}]} {
    %c0 = arith.constant 0 : index
    %c0_0 = arith.constant 0 : index
    %0 = vector.load %arg1[%c0, %c0_0] : memref<16x1024xf32, #tpu.memory_space<vmem>>, vector<16x1024xf32>
    %c0_1 = arith.constant 0 : index
    %c0_2 = arith.constant 0 : index
    %1 = vector.load %arg2[%c0_1, %c0_2] : memref<1024x128xf32, #tpu.memory_space<vmem>>, vector<1024x128xf32>
    %cst = arith.constant dense<0.000000e+00> : vector<16x128xf32>
    %2 = tpu.matmul %0, %1, %cst {dimension_numbers = #tpu.dot_dimension_numbers<[1], [0], [0], [1], [0, 0, 1, 1], [], []>} : vector<16x1024xf32>, vector<1024x128xf32>, vector<16x128xf32> -> vector<16x128xf32>
    %c0_3 = arith.constant 0 : index
    %c0_4 = arith.constant 0 : index
    %3 = vector.load %arg3[%c0_3, %c0_4] : memref<1x128xf32, #tpu.memory_space<vmem>>, vector<1x128xf32>
    %4 = vector.broadcast %3 : vector<1x128xf32> to vector<16x128xf32>
    %5 = arith.addf %2, %4 : vector<16x128xf32>
    %cst_5 = arith.constant 0.000000e+00 : f32
    %6 = vector.broadcast %cst_5 : f32 to vector<16x128xf32>
    %cst_6 = arith.constant 0.899999976 : f32
    %7 = vector.broadcast %cst_6 : f32 to vector<16x128xf32>
    %8 = arith.mulf %7, %6 : vector<16x128xf32>
    %9 = arith.addf %8, %5 : vector<16x128xf32>
    %cst_7 = arith.constant 1.000000e+00 : f32
    %10 = vector.broadcast %cst_7 : f32 to vector<16x128xf32>
    %11 = arith.cmpf ogt, %9, %10 : vector<16x128xf32>
    %12 = arith.extui %11 : vector<16x128xi1> to vector<16x128xi32>
    %13 = arith.sitofp %12 : vector<16x128xi32> to vector<16x128xf32>
    %c0_8 = arith.constant 0 : index
    %c0_9 = arith.constant 0 : index
    %14 = vector.load %arg7[%c0_8, %c0_9] : memref<128x128xf32, #tpu.memory_space<vmem>>, vector<16x128xf32>
    tpu.vector_store %arg7[%c0_8, %c0_9], %13 {strides = array<i32>} : memref<128x128xf32, #tpu.memory_space<vmem>>, vector<16x128xf32>,
    %cst_10 = arith.constant 1.000000e+00 : f32
    %15 = vector.broadcast %cst_10 : f32 to vector<16x128xf32>
    %16 = arith.subf %9, %15 : vector<16x128xf32>
    %17 = arith.select %11, %16, %9 : vector<16x128xi1>, vector<16x128xf32>
    %cst_11 = arith.constant 0.899999976 : f32
    %18 = vector.broadcast %cst_11 : f32 to vector<16x128xf32>
    %19 = arith.mulf %18, %17 : vector<16x128xf32>
    %20 = arith.addf %19, %5 : vector<16x128xf32>
    %cst_12 = arith.constant 1.000000e+00 : f32
    %21 = vector.broadcast %cst_12 : f32 to vector<16x128xf32>
    %22 = arith.cmpf ogt, %20, %21 : vector<16x128xf32>
    %23 = arith.extui %22 : vector<16x128xi1> to vector<16x128xi32>
    %24 = arith.sitofp %23 : vector<16x128xi32> to vector<16x128xf32>
    %c16 = arith.constant 16 : index
    %c0_13 = arith.constant 0 : index
    %25 = vector.load %arg7[%c16, %c0_13] : memref<128x128xf32, #tpu.memory_space<vmem>>, vector<16x128xf32>
    tpu.vector_store %arg7[%c16, %c0_13], %24 {strides = array<i32>} : memref<128x128xf32, #tpu.memory_space<vmem>>, vector<16x128xf32>,
    %cst_14 = arith.constant 1.000000e+00 : f32
    %26 = vector.broadcast %cst_14 : f32 to vector<16x128xf32>
    %27 = arith.subf %20, %26 : vector<16x128xf32>
    %28 = arith.select %22, %27, %20 : vector<16x128xi1>, vector<16x128xf32>
    %cst_15 = arith.constant 0.899999976 : f32
    %29 = vector.broadcast %cst_15 : f32 to vector<16x128xf32>
    %30 = arith.mulf %29, %28 : vector<16x128xf32>
    %31 = arith.addf %30, %5 : vector<16x128xf32>
    %cst_16 = arith.constant 1.000000e+00 : f32
    %32 = vector.broadcast %cst_16 : f32 to vector<16x128xf32>
    %33 = arith.cmpf ogt, %31, %32 : vector<16x128xf32>
    %34 = arith.extui %33 : vector<16x128xi1> to vector<16x128xi32>
    %35 = arith.sitofp %34 : vector<16x128xi32> to vector<16x128xf32>
    %c32 = arith.constant 32 : index
    %c0_17 = arith.constant 0 : index
    %36 = vector.load %arg7[%c32, %c0_17] : memref<128x128xf32, #tpu.memory_space<vmem>>, vector<16x128xf32>
    tpu.vector_store %arg7[%c32, %c0_17], %35 {strides = array<i32>} : memref<128x128xf32, #tpu.memory_space<vmem>>, vector<16x128xf32>,
    %cst_18 = arith.constant 1.000000e+00 : f32
    %37 = vector.broadcast %cst_18 : f32 to vector<16x128xf32>
    %38 = arith.subf %31, %37 : vector<16x128xf32>
    %39 = arith.select %33, %38, %31 : vector<16x128xi1>, vector<16x128xf32>
    %cst_19 = arith.constant 0.899999976 : f32
    %40 = vector.broadcast %cst_19 : f32 to vector<16x128xf32>
    %41 = arith.mulf %40, %39 : vector<16x128xf32>
    %42 = arith.addf %41, %5 : vector<16x128xf32>
    %cst_20 = arith.constant 1.000000e+00 : f32
    %43 = vector.broadcast %cst_20 : f32 to vector<16x128xf32>
    %44 = arith.cmpf ogt, %42, %43 : vector<16x128xf32>
    %45 = arith.extui %44 : vector<16x128xi1> to vector<16x128xi32>
    %46 = arith.sitofp %45 : vector<16x128xi32> to vector<16x128xf32>
    %c48 = arith.constant 48 : index
    %c0_21 = arith.constant 0 : index
    %47 = vector.load %arg7[%c48, %c0_21] : memref<128x128xf32, #tpu.memory_space<vmem>>, vector<16x128xf32>
    tpu.vector_store %arg7[%c48, %c0_21], %46 {strides = array<i32>} : memref<128x128xf32, #tpu.memory_space<vmem>>, vector<16x128xf32>,
    %cst_22 = arith.constant 1.000000e+00 : f32
    %48 = vector.broadcast %cst_22 : f32 to vector<16x128xf32>
    %49 = arith.subf %42, %48 : vector<16x128xf32>
    %50 = arith.select %44, %49, %42 : vector<16x128xi1>, vector<16x128xf32>
    %cst_23 = arith.constant 0.899999976 : f32
    %51 = vector.broadcast %cst_23 : f32 to vector<16x128xf32>
    %52 = arith.mulf %51, %50 : vector<16x128xf32>
    %53 = arith.addf %52, %5 : vector<16x128xf32>
    %cst_24 = arith.constant 1.000000e+00 : f32
    %54 = vector.broadcast %cst_24 : f32 to vector<16x128xf32>
    %55 = arith.cmpf ogt, %53, %54 : vector<16x128xf32>
    %56 = arith.extui %55 : vector<16x128xi1> to vector<16x128xi32>
    %57 = arith.sitofp %56 : vector<16x128xi32> to vector<16x128xf32>
    %c64 = arith.constant 64 : index
    %c0_25 = arith.constant 0 : index
    %58 = vector.load %arg7[%c64, %c0_25] : memref<128x128xf32, #tpu.memory_space<vmem>>, vector<16x128xf32>
    tpu.vector_store %arg7[%c64, %c0_25], %57 {strides = array<i32>} : memref<128x128xf32, #tpu.memory_space<vmem>>, vector<16x128xf32>,
    %cst_26 = arith.constant 1.000000e+00 : f32
    %59 = vector.broadcast %cst_26 : f32 to vector<16x128xf32>
    %60 = arith.subf %53, %59 : vector<16x128xf32>
    %61 = arith.select %55, %60, %53 : vector<16x128xi1>, vector<16x128xf32>
    %cst_27 = arith.constant 0.899999976 : f32
    %62 = vector.broadcast %cst_27 : f32 to vector<16x128xf32>
    %63 = arith.mulf %62, %61 : vector<16x128xf32>
    %64 = arith.addf %63, %5 : vector<16x128xf32>
    %cst_28 = arith.constant 1.000000e+00 : f32
    %65 = vector.broadcast %cst_28 : f32 to vector<16x128xf32>
    %66 = arith.cmpf ogt, %64, %65 : vector<16x128xf32>
    %67 = arith.extui %66 : vector<16x128xi1> to vector<16x128xi32>
    %68 = arith.sitofp %67 : vector<16x128xi32> to vector<16x128xf32>
    %c80 = arith.constant 80 : index
    %c0_29 = arith.constant 0 : index
    %69 = vector.load %arg7[%c80, %c0_29] : memref<128x128xf32, #tpu.memory_space<vmem>>, vector<16x128xf32>
    tpu.vector_store %arg7[%c80, %c0_29], %68 {strides = array<i32>} : memref<128x128xf32, #tpu.memory_space<vmem>>, vector<16x128xf32>,
    %cst_30 = arith.constant 1.000000e+00 : f32
    %70 = vector.broadcast %cst_30 : f32 to vector<16x128xf32>
    %71 = arith.subf %64, %70 : vector<16x128xf32>
    %72 = arith.select %66, %71, %64 : vector<16x128xi1>, vector<16x128xf32>
    %cst_31 = arith.constant 0.899999976 : f32
    %73 = vector.broadcast %cst_31 : f32 to vector<16x128xf32>
    %74 = arith.mulf %73, %72 : vector<16x128xf32>
    %75 = arith.addf %74, %5 : vector<16x128xf32>
    %cst_32 = arith.constant 1.000000e+00 : f32
    %76 = vector.broadcast %cst_32 : f32 to vector<16x128xf32>
    %77 = arith.cmpf ogt, %75, %76 : vector<16x128xf32>
    %78 = arith.extui %77 : vector<16x128xi1> to vector<16x128xi32>
    %79 = arith.sitofp %78 : vector<16x128xi32> to vector<16x128xf32>
    %c96 = arith.constant 96 : index
    %c0_33 = arith.constant 0 : index
    %80 = vector.load %arg7[%c96, %c0_33] : memref<128x128xf32, #tpu.memory_space<vmem>>, vector<16x128xf32>
    tpu.vector_store %arg7[%c96, %c0_33], %79 {strides = array<i32>} : memref<128x128xf32, #tpu.memory_space<vmem>>, vector<16x128xf32>,
    %cst_34 = arith.constant 1.000000e+00 : f32
    %81 = vector.broadcast %cst_34 : f32 to vector<16x128xf32>
    %82 = arith.subf %75, %81 : vector<16x128xf32>
    %83 = arith.select %77, %82, %75 : vector<16x128xi1>, vector<16x128xf32>
    %cst_35 = arith.constant 0.899999976 : f32
    %84 = vector.broadcast %cst_35 : f32 to vector<16x128xf32>
    %85 = arith.mulf %84, %83 : vector<16x128xf32>
    %86 = arith.addf %85, %5 : vector<16x128xf32>
    %cst_36 = arith.constant 1.000000e+00 : f32
    %87 = vector.broadcast %cst_36 : f32 to vector<16x128xf32>
    %88 = arith.cmpf ogt, %86, %87 : vector<16x128xf32>
    %89 = arith.extui %88 : vector<16x128xi1> to vector<16x128xi32>
    %90 = arith.sitofp %89 : vector<16x128xi32> to vector<16x128xf32>
    %c112 = arith.constant 112 : index
    %c0_37 = arith.constant 0 : index
    %91 = vector.load %arg7[%c112, %c0_37] : memref<128x128xf32, #tpu.memory_space<vmem>>, vector<16x128xf32>
    tpu.vector_store %arg7[%c112, %c0_37], %90 {strides = array<i32>} : memref<128x128xf32, #tpu.memory_space<vmem>>, vector<16x128xf32>,
    %c0_38 = arith.constant 0 : index
    %c0_39 = arith.constant 0 : index
    %92 = vector.load %arg7[%c0_38, %c0_39] : memref<128x128xf32, #tpu.memory_space<vmem>>, vector<128x128xf32>
    %c0_40 = arith.constant 0 : index
    %c0_41 = arith.constant 0 : index
    %93 = vector.load %arg4[%c0_40, %c0_41] : memref<128x128xf32, #tpu.memory_space<vmem>>, vector<128x128xf32>
    %cst_42 = arith.constant dense<0.000000e+00> : vector<128x128xf32>
    %94 = tpu.matmul %92, %93, %cst_42 {dimension_numbers = #tpu.dot_dimension_numbers<[1], [0], [0], [1], [0, 0, 1, 1], [], []>} : vector<128x128xf32>, vector<128x128xf32>, vector<128x128xf32> -> vector<128x128xf32>
    %c0_43 = arith.constant 0 : index
    %c0_44 = arith.constant 0 : index
    %95 = vector.load %arg5[%c0_43, %c0_44] : memref<1x128xf32, #tpu.memory_space<vmem>>, vector<1x128xf32>
    %96 = vector.broadcast %95 : vector<1x128xf32> to vector<128x128xf32>
    %97 = arith.addf %94, %96 : vector<128x128xf32>
    %cst_45 = arith.constant 0.000000e+00 : f32
    %98 = vector.broadcast %cst_45 : f32 to vector<16x128xf32>
    %cst_46 = arith.constant 0.000000e+00 : f32
    %99 = vector.broadcast %cst_46 : f32 to vector<16x128xf32>
    %100 = vector.extract_strided_slice %97 {offsets = [0, 0], sizes = [16, 128], strides = [1, 1]} : vector<128x128xf32> to vector<16x128xf32>
    %cst_47 = arith.constant 0.899999976 : f32
    %101 = vector.broadcast %cst_47 : f32 to vector<16x128xf32>
    %102 = arith.mulf %101, %98 : vector<16x128xf32>
    %103 = arith.addf %102, %100 : vector<16x128xf32>
    %cst_48 = arith.constant 1.000000e+00 : f32
    %104 = vector.broadcast %cst_48 : f32 to vector<16x128xf32>
    %105 = arith.cmpf ogt, %103, %104 : vector<16x128xf32>
    %cst_49 = arith.constant 1.000000e+00 : f32
    %106 = vector.broadcast %cst_49 : f32 to vector<16x128xf32>
    %107 = arith.subf %103, %106 : vector<16x128xf32>
    %108 = arith.select %105, %107, %103 : vector<16x128xi1>, vector<16x128xf32>
    %109 = arith.extui %105 : vector<16x128xi1> to vector<16x128xi32>
    %110 = arith.sitofp %109 : vector<16x128xi32> to vector<16x128xf32>
    %111 = arith.addf %99, %110 : vector<16x128xf32>
    %112 = vector.extract_strided_slice %97 {offsets = [16, 0], sizes = [16, 128], strides = [1, 1]} : vector<128x128xf32> to vector<16x128xf32>
    %cst_50 = arith.constant 0.899999976 : f32
    %113 = vector.broadcast %cst_50 : f32 to vector<16x128xf32>
    %114 = arith.mulf %113, %108 : vector<16x128xf32>
    %115 = arith.addf %114, %112 : vector<16x128xf32>
    %cst_51 = arith.constant 1.000000e+00 : f32
    %116 = vector.broadcast %cst_51 : f32 to vector<16x128xf32>
    %117 = arith.cmpf ogt, %115, %116 : vector<16x128xf32>
    %cst_52 = arith.constant 1.000000e+00 : f32
    %118 = vector.broadcast %cst_52 : f32 to vector<16x128xf32>
    %119 = arith.subf %115, %118 : vector<16x128xf32>
    %120 = arith.select %117, %119, %115 : vector<16x128xi1>, vector<16x128xf32>
    %121 = arith.extui %117 : vector<16x128xi1> to vector<16x128xi32>
    %122 = arith.sitofp %121 : vector<16x128xi32> to vector<16x128xf32>
    %123 = arith.addf %111, %122 : vector<16x128xf32>
    %124 = vector.extract_strided_slice %97 {offsets = [32, 0], sizes = [16, 128], strides = [1, 1]} : vector<128x128xf32> to vector<16x128xf32>
    %cst_53 = arith.constant 0.899999976 : f32
    %125 = vector.broadcast %cst_53 : f32 to vector<16x128xf32>
    %126 = arith.mulf %125, %120 : vector<16x128xf32>
    %127 = arith.addf %126, %124 : vector<16x128xf32>
    %cst_54 = arith.constant 1.000000e+00 : f32
    %128 = vector.broadcast %cst_54 : f32 to vector<16x128xf32>
    %129 = arith.cmpf ogt, %127, %128 : vector<16x128xf32>
    %cst_55 = arith.constant 1.000000e+00 : f32
    %130 = vector.broadcast %cst_55 : f32 to vector<16x128xf32>
    %131 = arith.subf %127, %130 : vector<16x128xf32>
    %132 = arith.select %129, %131, %127 : vector<16x128xi1>, vector<16x128xf32>
    %133 = arith.extui %129 : vector<16x128xi1> to vector<16x128xi32>
    %134 = arith.sitofp %133 : vector<16x128xi32> to vector<16x128xf32>
    %135 = arith.addf %123, %134 : vector<16x128xf32>
    %136 = vector.extract_strided_slice %97 {offsets = [48, 0], sizes = [16, 128], strides = [1, 1]} : vector<128x128xf32> to vector<16x128xf32>
    %cst_56 = arith.constant 0.899999976 : f32
    %137 = vector.broadcast %cst_56 : f32 to vector<16x128xf32>
    %138 = arith.mulf %137, %132 : vector<16x128xf32>
    %139 = arith.addf %138, %136 : vector<16x128xf32>
    %cst_57 = arith.constant 1.000000e+00 : f32
    %140 = vector.broadcast %cst_57 : f32 to vector<16x128xf32>
    %141 = arith.cmpf ogt, %139, %140 : vector<16x128xf32>
    %cst_58 = arith.constant 1.000000e+00 : f32
    %142 = vector.broadcast %cst_58 : f32 to vector<16x128xf32>
    %143 = arith.subf %139, %142 : vector<16x128xf32>
    %144 = arith.select %141, %143, %139 : vector<16x128xi1>, vector<16x128xf32>
    %145 = arith.extui %141 : vector<16x128xi1> to vector<16x128xi32>
    %146 = arith.sitofp %145 : vector<16x128xi32> to vector<16x128xf32>
    %147 = arith.addf %135, %146 : vector<16x128xf32>
    %148 = vector.extract_strided_slice %97 {offsets = [64, 0], sizes = [16, 128], strides = [1, 1]} : vector<128x128xf32> to vector<16x128xf32>
    %cst_59 = arith.constant 0.899999976 : f32
    %149 = vector.broadcast %cst_59 : f32 to vector<16x128xf32>
    %150 = arith.mulf %149, %144 : vector<16x128xf32>
    %151 = arith.addf %150, %148 : vector<16x128xf32>
    %cst_60 = arith.constant 1.000000e+00 : f32
    %152 = vector.broadcast %cst_60 : f32 to vector<16x128xf32>
    %153 = arith.cmpf ogt, %151, %152 : vector<16x128xf32>
    %cst_61 = arith.constant 1.000000e+00 : f32
    %154 = vector.broadcast %cst_61 : f32 to vector<16x128xf32>
    %155 = arith.subf %151, %154 : vector<16x128xf32>
    %156 = arith.select %153, %155, %151 : vector<16x128xi1>, vector<16x128xf32>
    %157 = arith.extui %153 : vector<16x128xi1> to vector<16x128xi32>
    %158 = arith.sitofp %157 : vector<16x128xi32> to vector<16x128xf32>
    %159 = arith.addf %147, %158 : vector<16x128xf32>
    %160 = vector.extract_strided_slice %97 {offsets = [80, 0], sizes = [16, 128], strides = [1, 1]} : vector<128x128xf32> to vector<16x128xf32>
    %cst_62 = arith.constant 0.899999976 : f32
    %161 = vector.broadcast %cst_62 : f32 to vector<16x128xf32>
    %162 = arith.mulf %161, %156 : vector<16x128xf32>
    %163 = arith.addf %162, %160 : vector<16x128xf32>
    %cst_63 = arith.constant 1.000000e+00 : f32
    %164 = vector.broadcast %cst_63 : f32 to vector<16x128xf32>
    %165 = arith.cmpf ogt, %163, %164 : vector<16x128xf32>
    %cst_64 = arith.constant 1.000000e+00 : f32
    %166 = vector.broadcast %cst_64 : f32 to vector<16x128xf32>
    %167 = arith.subf %163, %166 : vector<16x128xf32>
    %168 = arith.select %165, %167, %163 : vector<16x128xi1>, vector<16x128xf32>
    %169 = arith.extui %165 : vector<16x128xi1> to vector<16x128xi32>
    %170 = arith.sitofp %169 : vector<16x128xi32> to vector<16x128xf32>
    %171 = arith.addf %159, %170 : vector<16x128xf32>
    %172 = vector.extract_strided_slice %97 {offsets = [96, 0], sizes = [16, 128], strides = [1, 1]} : vector<128x128xf32> to vector<16x128xf32>
    %cst_65 = arith.constant 0.899999976 : f32
    %173 = vector.broadcast %cst_65 : f32 to vector<16x128xf32>
    %174 = arith.mulf %173, %168 : vector<16x128xf32>
    %175 = arith.addf %174, %172 : vector<16x128xf32>
    %cst_66 = arith.constant 1.000000e+00 : f32
    %176 = vector.broadcast %cst_66 : f32 to vector<16x128xf32>
    %177 = arith.cmpf ogt, %175, %176 : vector<16x128xf32>
    %cst_67 = arith.constant 1.000000e+00 : f32
    %178 = vector.broadcast %cst_67 : f32 to vector<16x128xf32>
    %179 = arith.subf %175, %178 : vector<16x128xf32>
    %180 = arith.select %177, %179, %175 : vector<16x128xi1>, vector<16x128xf32>
    %181 = arith.extui %177 : vector<16x128xi1> to vector<16x128xi32>
    %182 = arith.sitofp %181 : vector<16x128xi32> to vector<16x128xf32>
    %183 = arith.addf %171, %182 : vector<16x128xf32>
    %184 = vector.extract_strided_slice %97 {offsets = [112, 0], sizes = [16, 128], strides = [1, 1]} : vector<128x128xf32> to vector<16x128xf32>
    %cst_68 = arith.constant 0.899999976 : f32
    %185 = vector.broadcast %cst_68 : f32 to vector<16x128xf32>
    %186 = arith.mulf %185, %180 : vector<16x128xf32>
    %187 = arith.addf %186, %184 : vector<16x128xf32>
    %cst_69 = arith.constant 1.000000e+00 : f32
    %188 = vector.broadcast %cst_69 : f32 to vector<16x128xf32>
    %189 = arith.cmpf ogt, %187, %188 : vector<16x128xf32>
    %190 = arith.extui %189 : vector<16x128xi1> to vector<16x128xi32>
    %191 = arith.sitofp %190 : vector<16x128xi32> to vector<16x128xf32>
    %192 = arith.addf %183, %191 : vector<16x128xf32>
    %c0_70 = arith.constant 0 : index
    %c0_71 = arith.constant 0 : index
    %193 = vector.load %arg6[%c0_70, %c0_71] : memref<16x128xf32, #tpu.memory_space<vmem>>, vector<16x128xf32>
    tpu.vector_store %arg6[%c0_70, %c0_71], %192 {strides = array<i32>} : memref<16x128xf32, #tpu.memory_space<vmem>>, vector<16x128xf32>,
    return
  }
  func.func @transform_0(%arg0: i32) -> (i32, i32) {
    %c0_i32 = arith.constant 0 : i32
    %c0_i32_0 = arith.constant 0 : i32
    return %arg0, %c0_i32 : i32, i32
  }
  func.func @transform_1(%arg0: i32) -> (i32, i32) {
    %c0_i32 = arith.constant 0 : i32
    %c0_i32_0 = arith.constant 0 : i32
    %c0_i32_1 = arith.constant 0 : i32
    return %c0_i32, %c0_i32_0 : i32, i32
  }
  func.func @transform_2(%arg0: i32) -> (i32, i32) {
    %c0_i32 = arith.constant 0 : i32
    %c0_i32_0 = arith.constant 0 : i32
    %c0_i32_1 = arith.constant 0 : i32
    return %c0_i32, %c0_i32_0 : i32, i32
  }
  func.func @transform_3(%arg0: i32) -> (i32, i32) {
    %c0_i32 = arith.constant 0 : i32
    %c0_i32_0 = arith.constant 0 : i32
    %c0_i32_1 = arith.constant 0 : i32
    return %c0_i32, %c0_i32_0 : i32, i32
  }
  func.func @transform_4(%arg0: i32) -> (i32, i32) {
    %c0_i32 = arith.constant 0 : i32
    %c0_i32_0 = arith.constant 0 : i32
    %c0_i32_1 = arith.constant 0 : i32
    return %c0_i32, %c0_i32_0 : i32, i32
  }
  func.func @transform_5(%arg0: i32) -> (i32, i32) {
    %c0_i32 = arith.constant 0 : i32
    %c0_i32_0 = arith.constant 0 : i32
    return %arg0, %c0_i32 : i32, i32
  }
}

</mosaic_0001>

<llo_original>
// kernel: tpu_custom_call.1
$region0: #{tpu_custom_call.1}
  #allocation0 [shape = 'u32[]', space=smem, size = 0x4, offset = 0x4, fixed_abs, tag = 'smem constant byte address 0x4 - core index']
  #allocation1 [shape = 'u32[144,128]{1,0:T(1,128)}', space=vmem, size = 0x12000, scoped, tag = 'internal scratch']
  #allocation2 [shape = 'f32[128,128]{1,0:T(8,128)}', space=vmem, size = 0x10000, scoped, tag = 'scratch operand']
  %s0 = inlined_call_operand.hbm [shape: f32[16,1024], index: 0, kind: input, shape index: {}]
  %s1 = inlined_call_operand.hbm [shape: f32[1024,128], index: 1, kind: input, shape index: {}]
  %s2 = inlined_call_operand.vmem [shape: f32[1,128], index: 2, kind: input, shape index: {}]
  %s3 = inlined_call_operand.hbm [shape: f32[128,128], index: 3, kind: input, shape index: {}]
  %s4 = inlined_call_operand.vmem [shape: f32[1,128], index: 4, kind: input, shape index: {}]
  %s5 = inlined_call_operand.hbm [shape: f32[16,128], index: 5, kind: output, shape index: {}]
  %s6 = sld [smem:[#allocation0]]
  $region42: #{tpu_custom_call.1} parent=0
    _
  %s8 = ssub.s32 1, %s6
  %s9 = scalar_select 0, %s8, %s6
  $region1: #{tpu_custom_call.1} parent=0
    #allocation3 [shape = 'u8[65536]{0}', space=vmem, size = 0x10000, scoped, tag = 'input window, operand 0, single buffered']
    #allocation4 [shape = 's32[1]{0}', space=sflag, size = 0x4, scoped, tag = 'scoped memory for tpu_custom_call.1']
    #allocation5 [shape = 's32[1]{0}', space=sflag, size = 0x4, scoped, tag = 'scoped memory for tpu_custom_call.1']
    #allocation6 [shape = 'u8[524288]{0}', space=vmem, size = 0x80000, scoped, tag = 'input window, operand 1, single buffered']
    #allocation7 [shape = 's32[1]{0}', space=sflag, size = 0x4, scoped, tag = 'scoped memory for tpu_custom_call.1']
    #allocation8 [shape = 'u8[65536]{0}', space=vmem, size = 0x10000, scoped, tag = 'input window, operand 3, single buffered']
    #allocation9 [shape = 'u8[8192]{0}', space=vmem, size = 0x2000, scoped, tag = 'output window, operand 0, single buffered']
    %10 = vsyncpa [#allocation4], 0
    %11 = vsyncpa [#allocation7], 0
    %12 = vsyncpa [#allocation5], 0
    // Predicated region
    $region2: #{tpu_custom_call.1} parent=1 // pred_check
      _
    $region3: #{tpu_custom_call.1} parent=1 // pred_check_branch
      %14 = sbr.rel (0) target = $region5
    $region4: #{tpu_custom_call.1} parent=1 // pred_region
      %s16 = ssub.s32 2048, 2048
      %17 = vsyncadd [#allocation4], %s16
      %s18 = sshll.u32 [#allocation3], 4
      %s19 = int_to_ptr.vmem [resolvable:$true] %s18
      %24 = dma.hbm_to_vmem [thread:$0]  %s0, 2048, %s19, [#allocation4], 1024, 1024, 64
    $region5: #{tpu_custom_call.1} parent=1 // pred_fallthru
      _
    // Predicated region
    $region6: #{tpu_custom_call.1} parent=1 // pred_check
      _
    $region7: #{tpu_custom_call.1} parent=1 // pred_check_branch
      %26 = sbr.rel (0) target = $region9
    $region8: #{tpu_custom_call.1} parent=1 // pred_region
      %s28 = ssub.s32 16384, 16384
      %29 = vsyncadd [#allocation7], %s28
      %s30 = sshll.u32 [#allocation6], 4
      %s31 = int_to_ptr.vmem [resolvable:$true] %s30
      %36 = dma.hbm_to_vmem [thread:$0]  %s1, 16384, %s31, [#allocation7], 128, 128, 8
    $region9: #{tpu_custom_call.1} parent=1 // pred_fallthru
      _
    // Predicated region
    $region10: #{tpu_custom_call.1} parent=1 // pred_check
      _
    $region11: #{tpu_custom_call.1} parent=1 // pred_check_branch
      %38 = sbr.rel (0) target = $region13
    $region12: #{tpu_custom_call.1} parent=1 // pred_region
      _
    $region13: #{tpu_custom_call.1} parent=1 // pred_fallthru
      _
    // Predicated region
    $region14: #{tpu_custom_call.1} parent=1 // pred_check
      _
    $region15: #{tpu_custom_call.1} parent=1 // pred_check_branch
      %40 = sbr.rel (0) target = $region17
    $region16: #{tpu_custom_call.1} parent=1 // pred_region
      %s42 = ssub.s32 2048, 2048
      %43 = vsyncadd [#allocation7], %s42
      %s44 = sshll.u32 [#allocation8], 4
      %s45 = int_to_ptr.vmem [resolvable:$true] %s44
      %50 = dma.hbm_to_vmem [thread:$0]  %s3, 2048, %s45, [#allocation7], 128, 128, 8
    $region17: #{tpu_custom_call.1} parent=1 // pred_fallthru
      _
    // Predicated region
    $region18: #{tpu_custom_call.1} parent=1 // pred_check
      _
    $region19: #{tpu_custom_call.1} parent=1 // pred_check_branch
      %52 = sbr.rel (0) target = $region21
    $region20: #{tpu_custom_call.1} parent=1 // pred_region
      _
    $region21: #{tpu_custom_call.1} parent=1 // pred_fallthru
      _
    // Predicated region
    $region22: #{tpu_custom_call.1} parent=1 // pred_check
      _
    $region23: #{tpu_custom_call.1} parent=1 // pred_check_branch
      %54 = sbr.rel (0) target = $region25
    $region24: #{tpu_custom_call.1} parent=1 // pred_region
      %55 = dma.done [#allocation4], 2048
    $region25: #{tpu_custom_call.1} parent=1 // pred_fallthru
      _
    // Predicated region
    $region26: #{tpu_custom_call.1} parent=1 // pred_check
      _
    $region27: #{tpu_custom_call.1} parent=1 // pred_check_branch
      %57 = sbr.rel (0) target = $region29
    $region28: #{tpu_custom_call.1} parent=1 // pred_region
      %58 = dma.done [#allocation7], 16384
    $region29: #{tpu_custom_call.1} parent=1 // pred_fallthru
      _
    // Predicated region
    $region30: #{tpu_custom_call.1} parent=1 // pred_check
      _
    $region31: #{tpu_custom_call.1} parent=1 // pred_check_branch
      %60 = sbr.rel (0) target = $region33
    $region32: #{tpu_custom_call.1} parent=1 // pred_region
      %61 = dma.done [#allocation7], 2048
    $region33: #{tpu_custom_call.1} parent=1 // pred_fallthru
      _
    %v62 = vld [vmem:[#allocation3] sm:$0xff]
    %v63 = vld [vmem:[#allocation3 + $0x8] sm:$0xff]
    %v64 = vld [vmem:[#allocation3 + $0x10] sm:$0xff]
    %v65 = vld [vmem:[#allocation3 + $0x18] sm:$0xff]
    %v66 = vld [vmem:[#allocation3 + $0x20] sm:$0xff]
    %v67 = vld [vmem:[#allocation3 + $0x28] sm:$0xff]
    %v68 = vld [vmem:[#allocation3 + $0x30] sm:$0xff]
    %v69 = vld [vmem:[#allocation3 + $0x38] sm:$0xff]
    %v70 = vld [vmem:[#allocation3 + $0x40] sm:$0xff]
    %v71 = vld [vmem:[#allocation3 + $0x48] sm:$0xff]
    %v72 = vld [vmem:[#allocation3 + $0x50] sm:$0xff]
    %v73 = vld [vmem:[#allocation3 + $0x58] sm:$0xff]
    %v74 = vld [vmem:[#allocation3 + $0x60] sm:$0xff]
    %v75 = vld [vmem:[#allocation3 + $0x68] sm:$0xff]
    %v76 = vld [vmem:[#allocation3 + $0x70] sm:$0xff]
    %v77 = vld [vmem:[#allocation3 + $0x78] sm:$0xff]
    %v78 = vld [vmem:[#allocation6] sm:$0xff]
    %v79 = vld [vmem:[#allocation6 + $0x8] sm:$0xff]
    %v80 = vld [vmem:[#allocation6 + $0x10] sm:$0xff]
    %v81 = vld [vmem:[#allocation6 + $0x18] sm:$0xff]
    %v82 = vld [vmem:[#allocation6 + $0x20] sm:$0xff]
    %v83 = vld [vmem:[#allocation6 + $0x28] sm:$0xff]
    %v84 = vld [vmem:[#allocation6 + $0x30] sm:$0xff]
    %v85 = vld [vmem:[#allocation6 + $0x38] sm:$0xff]
    %v86 = vld [vmem:[#allocation6 + $0x40] sm:$0xff]
    %v87 = vld [vmem:[#allocation6 + $0x48] sm:$0xff]
    %v88 = vld [vmem:[#allocation6 + $0x50] sm:$0xff]
    %v89 = vld [vmem:[#allocation6 + $0x58] sm:$0xff]
    %v90 = vld [vmem:[#allocation6 + $0x60] sm:$0xff]
    %v91 = vld [vmem:[#allocation6 + $0x68] sm:$0xff]
    %v92 = vld [vmem:[#allocation6 + $0x70] sm:$0xff]
    %v93 = vld [vmem:[#allocation6 + $0x78] sm:$0xff]
    %v94 = vld [vmem:[#allocation6 + $0x80] sm:$0xff]
    %v95 = vld [vmem:[#allocation6 + $0x88] sm:$0xff]
    %v96 = vld [vmem:[#allocation6 + $0x90] sm:$0xff]
    %v97 = vld [vmem:[#allocation6 + $0x98] sm:$0xff]
    %v98 = vld [vmem:[#allocation6 + $0xa0] sm:$0xff]
    %v99 = vld [vmem:[#allocation6 + $0xa8] sm:$0xff]
    %v100 = vld [vmem:[#allocation6 + $0xb0] sm:$0xff]
    %v101 = vld [vmem:[#allocation6 + $0xb8] sm:$0xff]
    %v102 = vld [vmem:[#allocation6 + $0xc0] sm:$0xff]
    %v103 = vld [vmem:[#allocation6 + $0xc8] sm:$0xff]
    %v104 = vld [vmem:[#allocation6 + $0xd0] sm:$0xff]
    %v105 = vld [vmem:[#allocation6 + $0xd8] sm:$0xff]
    %v106 = vld [vmem:[#allocation6 + $0xe0] sm:$0xff]
    %v107 = vld [vmem:[#allocation6 + $0xe8] sm:$0xff]
    %v108 = vld [vmem:[#allocation6 + $0xf0] sm:$0xff]
    %v109 = vld [vmem:[#allocation6 + $0xf8] sm:$0xff]
    %v110 = vld [vmem:[#allocation6 + $0x100] sm:$0xff]
    %v111 = vld [vmem:[#allocation6 + $0x108] sm:$0xff]
    %v112 = vld [vmem:[#allocation6 + $0x110] sm:$0xff]
    %v113 = vld [vmem:[#allocation6 + $0x118] sm:$0xff]
    %v114 = vld [vmem:[#allocation6 + $0x120] sm:$0xff]
    %v115 = vld [vmem:[#allocation6 + $0x128] sm:$0xff]
    %v116 = vld [vmem:[#allocation6 + $0x130] sm:$0xff]
    %v117 = vld [vmem:[#allocation6 + $0x138] sm:$0xff]
    %v118 = vld [vmem:[#allocation6 + $0x140] sm:$0xff]
    %v119 = vld [vmem:[#allocation6 + $0x148] sm:$0xff]
    %v120 = vld [vmem:[#allocation6 + $0x150] sm:$0xff]
    %v121 = vld [vmem:[#allocation6 + $0x158] sm:$0xff]
    %v122 = vld [vmem:[#allocation6 + $0x160] sm:$0xff]
    %v123 = vld [vmem:[#allocation6 + $0x168] sm:$0xff]
    %v124 = vld [vmem:[#allocation6 + $0x170] sm:$0xff]
    %v125 = vld [vmem:[#allocation6 + $0x178] sm:$0xff]
    %v126 = vld [vmem:[#allocation6 + $0x180] sm:$0xff]
    %v127 = vld [vmem:[#allocation6 + $0x188] sm:$0xff]
    %v128 = vld [vmem:[#allocation6 + $0x190] sm:$0xff]
    %v129 = vld [vmem:[#allocation6 + $0x198] sm:$0xff]
    %v130 = vld [vmem:[#allocation6 + $0x1a0] sm:$0xff]
    %v131 = vld [vmem:[#allocation6 + $0x1a8] sm:$0xff]
    %v132 = vld [vmem:[#allocation6 + $0x1b0] sm:$0xff]
    %v133 = vld [vmem:[#allocation6 + $0x1b8] sm:$0xff]
    %v134 = vld [vmem:[#allocation6 + $0x1c0] sm:$0xff]
    %v135 = vld [vmem:[#allocation6 + $0x1c8] sm:$0xff]
    %v136 = vld [vmem:[#allocation6 + $0x1d0] sm:$0xff]
    %v137 = vld [vmem:[#allocation6 + $0x1d8] sm:$0xff]
    %v138 = vld [vmem:[#allocation6 + $0x1e0] sm:$0xff]
    %v139 = vld [vmem:[#allocation6 + $0x1e8] sm:$0xff]
    %v140 = vld [vmem:[#allocation6 + $0x1f0] sm:$0xff]
    %v141 = vld [vmem:[#allocation6 + $0x1f8] sm:$0xff]
    %v142 = vld [vmem:[#allocation6 + $0x200] sm:$0xff]
    %v143 = vld [vmem:[#allocation6 + $0x208] sm:$0xff]
    %v144 = vld [vmem:[#allocation6 + $0x210] sm:$0xff]
    %v145 = vld [vmem:[#allocation6 + $0x218] sm:$0xff]
    %v146 = vld [vmem:[#allocation6 + $0x220] sm:$0xff]
    %v147 = vld [vmem:[#allocation6 + $0x228] sm:$0xff]
    %v148 = vld [vmem:[#allocation6 + $0x230] sm:$0xff]
    %v149 = vld [vmem:[#allocation6 + $0x238] sm:$0xff]
    %v150 = vld [vmem:[#allocation6 + $0x240] sm:$0xff]
    %v151 = vld [vmem:[#allocation6 + $0x248] sm:$0xff]
    %v152 = vld [vmem:[#allocation6 + $0x250] sm:$0xff]
    %v153 = vld [vmem:[#allocation6 + $0x258] sm:$0xff]
    %v154 = vld [vmem:[#allocation6 + $0x260] sm:$0xff]
    %v155 = vld [vmem:[#allocation6 + $0x268] sm:$0xff]
    %v156 = vld [vmem:[#allocation6 + $0x270] sm:$0xff]
    %v157 = vld [vmem:[#allocation6 + $0x278] sm:$0xff]
    %v158 = vld [vmem:[#allocation6 + $0x280] sm:$0xff]
    %v159 = vld [vmem:[#allocation6 + $0x288] sm:$0xff]
    %v160 = vld [vmem:[#allocation6 + $0x290] sm:$0xff]
    %v161 = vld [vmem:[#allocation6 + $0x298] sm:$0xff]
    %v162 = vld [vmem:[#allocation6 + $0x2a0] sm:$0xff]
    %v163 = vld [vmem:[#allocation6 + $0x2a8] sm:$0xff]
    %v164 = vld [vmem:[#allocation6 + $0x2b0] sm:$0xff]
    %v165 = vld [vmem:[#allocation6 + $0x2b8] sm:$0xff]
    %v166 = vld [vmem:[#allocation6 + $0x2c0] sm:$0xff]
    %v167 = vld [vmem:[#allocation6 + $0x2c8] sm:$0xff]
    %v168 = vld [vmem:[#allocation6 + $0x2d0] sm:$0xff]
    %v169 = vld [vmem:[#allocation6 + $0x2d8] sm:$0xff]
    %v170 = vld [vmem:[#allocation6 + $0x2e0] sm:$0xff]
    %v171 = vld [vmem:[#allocation6 + $0x2e8] sm:$0xff]
    %v172 = vld [vmem:[#allocation6 + $0x2f0] sm:$0xff]
    %v173 = vld [vmem:[#allocation6 + $0x2f8] sm:$0xff]
    %v174 = vld [vmem:[#allocation6 + $0x300] sm:$0xff]
    %v175 = vld [vmem:[#allocation6 + $0x308] sm:$0xff]
    %v176 = vld [vmem:[#allocation6 + $0x310] sm:$0xff]
    %v177 = vld [vmem:[#allocation6 + $0x318] sm:$0xff]
    %v178 = vld [vmem:[#allocation6 + $0x320] sm:$0xff]
    %v179 = vld [vmem:[#allocation6 + $0x328] sm:$0xff]
    %v180 = vld [vmem:[#allocation6 + $0x330] sm:$0xff]
    %v181 = vld [vmem:[#allocation6 + $0x338] sm:$0xff]
    %v182 = vld [vmem:[#allocation6 + $0x340] sm:$0xff]
    %v183 = vld [vmem:[#allocation6 + $0x348] sm:$0xff]
    %v184 = vld [vmem:[#allocation6 + $0x350] sm:$0xff]
    %v185 = vld [vmem:[#allocation6 + $0x358] sm:$0xff]
    %v186 = vld [vmem:[#allocation6 + $0x360] sm:$0xff]
    %v187 = vld [vmem:[#allocation6 + $0x368] sm:$0xff]
    %v188 = vld [vmem:[#allocation6 + $0x370] sm:$0xff]
    %v189 = vld [vmem:[#allocation6 + $0x378] sm:$0xff]
    %v190 = vld [vmem:[#allocation6 + $0x380] sm:$0xff]
    %v191 = vld [vmem:[#allocation6 + $0x388] sm:$0xff]
    %v192 = vld [vmem:[#allocation6 + $0x390] sm:$0xff]
    %v193 = vld [vmem:[#allocation6 + $0x398] sm:$0xff]
    %v194 = vld [vmem:[#allocation6 + $0x3a0] sm:$0xff]
    %v195 = vld [vmem:[#allocation6 + $0x3a8] sm:$0xff]
    %v196 = vld [vmem:[#allocation6 + $0x3b0] sm:$0xff]
    %v197 = vld [vmem:[#allocation6 + $0x3b8] sm:$0xff]
    %v198 = vld [vmem:[#allocation6 + $0x3c0] sm:$0xff]
    %v199 = vld [vmem:[#allocation6 + $0x3c8] sm:$0xff]
    %v200 = vld [vmem:[#allocation6 + $0x3d0] sm:$0xff]
    %v201 = vld [vmem:[#allocation6 + $0x3d8] sm:$0xff]
    %v202 = vld [vmem:[#allocation6 + $0x3e0] sm:$0xff]
    %v203 = vld [vmem:[#allocation6 + $0x3e8] sm:$0xff]
    %v204 = vld [vmem:[#allocation6 + $0x3f0] sm:$0xff]
    %v205 = vld [vmem:[#allocation6 + $0x3f8] sm:$0xff]
    %v206 = vld [vmem:[%s2] sm:$0x1]
    %v208 = vlaneseq
    %v209 = vshrl.u32 %v208, 7
    %v210 = vsub.s32 0, %v209
    %v211 = vrot.slane %v206, %v210
    %213 = vmatprep.subr.mxu0 0.0
    %214 = vmatpush1.msra.mxu0 %v78
    %215 = vmatprep.subr.mxu0 0.0
    %216 = vmatpush1.msra.mxu0 %v79
    %217 = vmatprep.subr.mxu0 0.0
    %218 = vmatpush1.msra.mxu0 %v80
    %219 = vmatprep.subr.mxu0 0.0
    %220 = vmatpush1.msra.mxu0 %v81
    %221 = vmatprep.subr.mxu0 0.0
    %222 = vmatpush1.msra.mxu0 %v82
    %223 = vmatprep.subr.mxu0 0.0
    %224 = vmatpush1.msra.mxu0 %v83
    %225 = vmatprep.subr.mxu0 0.0
    %226 = vmatpush1.msra.mxu0 %v84
    %227 = vmatprep.subr.mxu0 0.0
    %228 = vmatpush1.msra.mxu0 %v85
    %229 = vmatprep.subr.mxu0 0.0
    %230 = vmatpush1.msra.mxu0 %v86
    %231 = vmatprep.subr.mxu0 0.0
    %232 = vmatpush1.msra.mxu0 %v87
    %233 = vmatprep.subr.mxu0 0.0
    %234 = vmatpush1.msra.mxu0 %v88
    %235 = vmatprep.subr.mxu0 0.0
    %236 = vmatpush1.msra.mxu0 %v89
    %237 = vmatprep.subr.mxu0 0.0
    %238 = vmatpush1.msra.mxu0 %v90
    %239 = vmatprep.subr.mxu0 0.0
    %240 = vmatpush1.msra.mxu0 %v91
    %241 = vmatprep.subr.mxu0 0.0
    %242 = vmatpush1.msra.mxu0 %v92
    %243 = vmatprep.subr.mxu0 0.0
    %244 = vmatpush1.msra.mxu0 %v93
    %245 = vmatprep.subr.mxu0 0.0
    %246 = vmatpush1.msra.mxu0 %v94
    %247 = vmatprep.subr.mxu0 0.0
    %248 = vmatpush1.msra.mxu0 %v95
    %249 = vmatprep.subr.mxu0 0.0
    %250 = vmatpush1.msra.mxu0 %v96
    %251 = vmatprep.subr.mxu0 0.0
    %252 = vmatpush1.msra.mxu0 %v97
    %253 = vmatprep.subr.mxu0 0.0
    %254 = vmatpush1.msra.mxu0 %v98
    %255 = vmatprep.subr.mxu0 0.0
    %256 = vmatpush1.msra.mxu0 %v99
    %257 = vmatprep.subr.mxu0 0.0
    %258 = vmatpush1.msra.mxu0 %v100
    %259 = vmatprep.subr.mxu0 0.0
    %260 = vmatpush1.msra.mxu0 %v101
    %261 = vmatprep.subr.mxu0 0.0
    %262 = vmatpush1.msra.mxu0 %v102
    %263 = vmatprep.subr.mxu0 0.0
    %264 = vmatpush1.msra.mxu0 %v103
    %265 = vmatprep.subr.mxu0 0.0
    %266 = vmatpush1.msra.mxu0 %v104
    %267 = vmatprep.subr.mxu0 0.0
    %268 = vmatpush1.msra.mxu0 %v105
    %269 = vmatprep.subr.mxu0 0.0
    %270 = vmatpush1.msra.mxu0 %v106
    %271 = vmatprep.subr.mxu0 0.0
    %272 = vmatpush1.msra.mxu0 %v107
    %273 = vmatprep.subr.mxu0 0.0
    %274 = vmatpush1.msra.mxu0 %v108
    %275 = vmatprep.subr.mxu0 0.0
    %276 = vmatpush1.msra.mxu0 %v109
    %277 = vmatprep.mubr.f32.mxu0 %v63
    %278 = vmatmul.mubr.f32.gmra.mrb[0].mxu0 %v62
    %v279 = vpop.f32.mrb[0].mxu0
    %v280 = vadd.f32 %v211, %v279
    %v281 = vpop.f32.mrb[0].mxu0
    %282 = vmatprep.mubr.f32.mxu0 %v71
    %283 = vmatmul.mubr.f32.gmra.mrb[0].mxu0 %v70
    %v284 = vpop.f32.mrb[0].mxu0
    %v285 = vadd.f32 %v211, %v284
    %v286 = vpop.f32.mrb[0].mxu0
    %287 = vdwg.mxu0
    %288 = vmatprep.subr.mxu0 0.0
    %289 = vmatpush1.msra.mxu0 %v110
    %290 = vmatprep.subr.mxu0 0.0
    %291 = vmatpush1.msra.mxu0 %v111
    %292 = vmatprep.subr.mxu0 0.0
    %293 = vmatpush1.msra.mxu0 %v112
    %294 = vmatprep.subr.mxu0 0.0
    %295 = vmatpush1.msra.mxu0 %v113
    %296 = vmatprep.subr.mxu0 0.0
    %297 = vmatpush1.msra.mxu0 %v114
    %298 = vmatprep.subr.mxu0 0.0
    %299 = vmatpush1.msra.mxu0 %v115
    %300 = vmatprep.subr.mxu0 0.0
    %301 = vmatpush1.msra.mxu0 %v116
    %302 = vmatprep.subr.mxu0 0.0
    %303 = vmatpush1.msra.mxu0 %v117
    %304 = vmatprep.subr.mxu0 0.0
    %305 = vmatpush1.msra.mxu0 %v118
    %306 = vmatprep.subr.mxu0 0.0
    %307 = vmatpush1.msra.mxu0 %v119
    %308 = vmatprep.subr.mxu0 0.0
    %309 = vmatpush1.msra.mxu0 %v120
    %310 = vmatprep.subr.mxu0 0.0
    %311 = vmatpush1.msra.mxu0 %v121
    %312 = vmatprep.subr.mxu0 0.0
    %313 = vmatpush1.msra.mxu0 %v122
    %314 = vmatprep.subr.mxu0 0.0
    %315 = vmatpush1.msra.mxu0 %v123
    %316 = vmatprep.subr.mxu0 0.0
    %317 = vmatpush1.msra.mxu0 %v124
    %318 = vmatprep.subr.mxu0 0.0
    %319 = vmatpush1.msra.mxu0 %v125
    %320 = vmatprep.subr.mxu0 0.0
    %321 = vmatpush1.msra.mxu0 %v126
    %322 = vmatprep.subr.mxu0 0.0
    %323 = vmatpush1.msra.mxu0 %v127
    %324 = vmatprep.subr.mxu0 0.0
    %325 = vmatpush1.msra.mxu0 %v128
    %326 = vmatprep.subr.mxu0 0.0
    %327 = vmatpush1.msra.mxu0 %v129
    %328 = vmatprep.subr.mxu0 0.0
    %329 = vmatpush1.msra.mxu0 %v130
    %330 = vmatprep.subr.mxu0 0.0
    %331 = vmatpush1.msra.mxu0 %v131
    %332 = vmatprep.subr.mxu0 0.0
    %333 = vmatpush1.msra.mxu0 %v132
    %334 = vmatprep.subr.mxu0 0.0
    %335 = vmatpush1.msra.mxu0 %v133
    %336 = vmatprep.subr.mxu0 0.0
    %337 = vmatpush1.msra.mxu0 %v134
    %338 = vmatprep.subr.mxu0 0.0
    %339 = vmatpush1.msra.mxu0 %v135
    %340 = vmatprep.subr.mxu0 0.0
    %341 = vmatpush1.msra.mxu0 %v136
    %342 = vmatprep.subr.mxu0 0.0
    %343 = vmatpush1.msra.mxu0 %v137
    %344 = vmatprep.subr.mxu0 0.0
    %345 = vmatpush1.msra.mxu0 %v138
    %346 = vmatprep.subr.mxu0 0.0
    %347 = vmatpush1.msra.mxu0 %v139
    %348 = vmatprep.subr.mxu0 0.0
    %349 = vmatpush1.msra.mxu0 %v140
    %350 = vmatprep.subr.mxu0 0.0
    %351 = vmatpush1.msra.mxu0 %v141
    %352 = vmatprep.mubr.f32.mxu0 %v65
    %353 = vmatmul.mubr.f32.gmra.mrb[0].mxu0 %v64
    %v354 = vpop.f32.mrb[0].mxu0
    %v355 = vadd.f32 %v280, %v354
    %v356 = vpop.f32.mrb[0].mxu0
    %357 = vmatprep.mubr.f32.mxu0 %v73
    %358 = vmatmul.mubr.f32.gmra.mrb[0].mxu0 %v72
    %v359 = vpop.f32.mrb[0].mxu0
    %v360 = vadd.f32 %v285, %v359
    %v361 = vpop.f32.mrb[0].mxu0
    %362 = vdwg.mxu0
    %363 = vmatprep.subr.mxu0 0.0
    %364 = vmatpush1.msra.mxu0 %v142
    %365 = vmatprep.subr.mxu0 0.0
    %366 = vmatpush1.msra.mxu0 %v143
    %367 = vmatprep.subr.mxu0 0.0
    %368 = vmatpush1.msra.mxu0 %v144
    %369 = vmatprep.subr.mxu0 0.0
    %370 = vmatpush1.msra.mxu0 %v145
    %371 = vmatprep.subr.mxu0 0.0
    %372 = vmatpush1.msra.mxu0 %v146
    %373 = vmatprep.subr.mxu0 0.0
    %374 = vmatpush1.msra.mxu0 %v147
    %375 = vmatprep.subr.mxu0 0.0
    %376 = vmatpush1.msra.mxu0 %v148
    %377 = vmatprep.subr.mxu0 0.0
    %378 = vmatpush1.msra.mxu0 %v149
    %379 = vmatprep.subr.mxu0 0.0
    %380 = vmatpush1.msra.mxu0 %v150
    %381 = vmatprep.subr.mxu0 0.0
    %382 = vmatpush1.msra.mxu0 %v151
    %383 = vmatprep.subr.mxu0 0.0
    %384 = vmatpush1.msra.mxu0 %v152
    %385 = vmatprep.subr.mxu0 0.0
    %386 = vmatpush1.msra.mxu0 %v153
    %387 = vmatprep.subr.mxu0 0.0
    %388 = vmatpush1.msra.mxu0 %v154
    %389 = vmatprep.subr.mxu0 0.0
    %390 = vmatpush1.msra.mxu0 %v155
    %391 = vmatprep.subr.mxu0 0.0
    %392 = vmatpush1.msra.mxu0 %v156
    %393 = vmatprep.subr.mxu0 0.0
    %394 = vmatpush1.msra.mxu0 %v157
    %395 = vmatprep.subr.mxu0 0.0
    %396 = vmatpush1.msra.mxu0 %v158
    %397 = vmatprep.subr.mxu0 0.0
    %398 = vmatpush1.msra.mxu0 %v159
    %399 = vmatprep.subr.mxu0 0.0
    %400 = vmatpush1.msra.mxu0 %v160
    %401 = vmatprep.subr.mxu0 0.0
    %402 = vmatpush1.msra.mxu0 %v161
    %403 = vmatprep.subr.mxu0 0.0
    %404 = vmatpush1.msra.mxu0 %v162
    %405 = vmatprep.subr.mxu0 0.0
    %406 = vmatpush1.msra.mxu0 %v163
    %407 = vmatprep.subr.mxu0 0.0
    %408 = vmatpush1.msra.mxu0 %v164
    %409 = vmatprep.subr.mxu0 0.0
    %410 = vmatpush1.msra.mxu0 %v165
    %411 = vmatprep.subr.mxu0 0.0
    %412 = vmatpush1.msra.mxu0 %v166
    %413 = vmatprep.subr.mxu0 0.0
    %414 = vmatpush1.msra.mxu0 %v167
    %415 = vmatprep.subr.mxu0 0.0
    %416 = vmatpush1.msra.mxu0 %v168
    %417 = vmatprep.subr.mxu0 0.0
    %418 = vmatpush1.msra.mxu0 %v169
    %419 = vmatprep.subr.mxu0 0.0
    %420 = vmatpush1.msra.mxu0 %v170
    %421 = vmatprep.subr.mxu0 0.0
    %422 = vmatpush1.msra.mxu0 %v171
    %423 = vmatprep.subr.mxu0 0.0
    %424 = vmatpush1.msra.mxu0 %v172
    %425 = vmatprep.subr.mxu0 0.0
    %426 = vmatpush1.msra.mxu0 %v173
    %427 = vmatprep.mubr.f32.mxu0 %v67
    %428 = vmatmul.mubr.f32.gmra.mrb[0].mxu0 %v66
    %v429 = vpop.f32.mrb[0].mxu0
    %v430 = vadd.f32 %v355, %v429
    %v431 = vpop.f32.mrb[0].mxu0
    %432 = vmatprep.mubr.f32.mxu0 %v75
    %433 = vmatmul.mubr.f32.gmra.mrb[0].mxu0 %v74
    %v434 = vpop.f32.mrb[0].mxu0
    %v435 = vadd.f32 %v360, %v434
    %v436 = vpop.f32.mrb[0].mxu0
    %437 = vdwg.mxu0
    %438 = vmatprep.subr.mxu0 0.0
    %439 = vmatpush1.msra.mxu0 %v174
    %440 = vmatprep.subr.mxu0 0.0
    %441 = vmatpush1.msra.mxu0 %v175
    %442 = vmatprep.subr.mxu0 0.0
    %443 = vmatpush1.msra.mxu0 %v176
    %444 = vmatprep.subr.mxu0 0.0
    %445 = vmatpush1.msra.mxu0 %v177
    %446 = vmatprep.subr.mxu0 0.0
    %447 = vmatpush1.msra.mxu0 %v178
    %448 = vmatprep.subr.mxu0 0.0
    %449 = vmatpush1.msra.mxu0 %v179
    %450 = vmatprep.subr.mxu0 0.0
    %451 = vmatpush1.msra.mxu0 %v180
    %452 = vmatprep.subr.mxu0 0.0
    %453 = vmatpush1.msra.mxu0 %v181
    %454 = vmatprep.subr.mxu0 0.0
    %455 = vmatpush1.msra.mxu0 %v182
    %456 = vmatprep.subr.mxu0 0.0
    %457 = vmatpush1.msra.mxu0 %v183
    %458 = vmatprep.subr.mxu0 0.0
    %459 = vmatpush1.msra.mxu0 %v184
    %460 = vmatprep.subr.mxu0 0.0
    %461 = vmatpush1.msra.mxu0 %v185
    %462 = vmatprep.subr.mxu0 0.0
    %463 = vmatpush1.msra.mxu0 %v186
    %464 = vmatprep.subr.mxu0 0.0
    %465 = vmatpush1.msra.mxu0 %v187
    %466 = vmatprep.subr.mxu0 0.0
    %467 = vmatpush1.msra.mxu0 %v188
    %468 = vmatprep.subr.mxu0 0.0
    %469 = vmatpush1.msra.mxu0 %v189
    %470 = vmatprep.subr.mxu0 0.0
    %471 = vmatpush1.msra.mxu0 %v190
    %472 = vmatprep.subr.mxu0 0.0
    %473 = vmatpush1.msra.mxu0 %v191
    %474 = vmatprep.subr.mxu0 0.0
    %475 = vmatpush1.msra.mxu0 %v192
    %476 = vmatprep.subr.mxu0 0.0
    %477 = vmatpush1.msra.mxu0 %v193
    %478 = vmatprep.subr.mxu0 0.0
    %479 = vmatpush1.msra.mxu0 %v194
    %480 = vmatprep.subr.mxu0 0.0
    %481 = vmatpush1.msra.mxu0 %v195
    %482 = vmatprep.subr.mxu0 0.0
    %483 = vmatpush1.msra.mxu0 %v196
    %484 = vmatprep.subr.mxu0 0.0
    %485 = vmatpush1.msra.mxu0 %v197
    %486 = vmatprep.subr.mxu0 0.0
    %487 = vmatpush1.msra.mxu0 %v198
    %488 = vmatprep.subr.mxu0 0.0
    %489 = vmatpush1.msra.mxu0 %v199
    %490 = vmatprep.subr.mxu0 0.0
    %491 = vmatpush1.msra.mxu0 %v200
    %492 = vmatprep.subr.mxu0 0.0
    %493 = vmatpush1.msra.mxu0 %v201
    %494 = vmatprep.subr.mxu0 0.0
    %495 = vmatpush1.msra.mxu0 %v202
    %496 = vmatprep.subr.mxu0 0.0
    %497 = vmatpush1.msra.mxu0 %v203
    %498 = vmatprep.subr.mxu0 0.0
    %499 = vmatpush1.msra.mxu0 %v204
    %500 = vmatprep.subr.mxu0 0.0
    %501 = vmatpush1.msra.mxu0 %v205
    %502 = vmatprep.mubr.f32.mxu0 %v69
    %503 = vmatmul.mubr.f32.gmra.mrb[0].mxu0 %v68
    %v504 = vpop.f32.mrb[0].mxu0
    %v505 = vadd.f32 %v430, %v504
    %v506 = vpop.f32.mrb[0].mxu0
    %507 = vmatprep.mubr.f32.mxu0 %v77
    %508 = vmatmul.mubr.f32.gmra.mrb[0].mxu0 %v76
    %v509 = vpop.f32.mrb[0].mxu0
    %v510 = vadd.f32 %v435, %v509
    %v511 = vpop.f32.mrb[0].mxu0
    %512 = vdwg.mxu0
    %v513 = vadd.f32 %v505, 0.0
    %v514 = vadd.f32 %v510, 0.0
    %vm515 = vcmp.gt.f32.partialorder %v513, 1.0
    %vm516 = vcmp.gt.f32.partialorder %v514, 1.0
    %v517 = vsel %vm515, 1, 0
    %v518 = vsel %vm516, 1, 0
    %v519 = vcvt.s32.f32 %v517
    %v520 = vcvt.s32.f32 %v518
    %521 = vst [vmem:[#allocation2] sm:$0xff] %v519
    %522 = vst [vmem:[#allocation2 + $0x8] sm:$0xff] %v520
    %v523 = vsub.f32 %v513, 1.0
    %v524 = vsub.f32 %v514, 1.0
    %v525 = vsel %vm515, %v523, %v513
    %v526 = vsel %vm516, %v524, %v514
    %v527 = vmul.f32 %v525, 0.9
    %v528 = vmul.f32 %v526, 0.9
    %v529 = vadd.f32 %v527, %v505
    %v530 = vadd.f32 %v528, %v510
    %vm531 = vcmp.gt.f32.partialorder %v529, 1.0
    %vm532 = vcmp.gt.f32.partialorder %v530, 1.0
    %v533 = vsel %vm531, 1, 0
    %v534 = vsel %vm532, 1, 0
    %v535 = vcvt.s32.f32 %v533
    %v536 = vcvt.s32.f32 %v534
    %537 = vst [vmem:[#allocation2 + $0x10] sm:$0xff] %v535
    %538 = vst [vmem:[#allocation2 + $0x18] sm:$0xff] %v536
    %v539 = vsub.f32 %v529, 1.0
    %v540 = vsub.f32 %v530, 1.0
    %v541 = vsel %vm531, %v539, %v529
    %v542 = vsel %vm532, %v540, %v530
    %v543 = vmul.f32 %v541, 0.9
    %v544 = vmul.f32 %v542, 0.9
    %v545 = vadd.f32 %v543, %v505
    %v546 = vadd.f32 %v544, %v510
    %vm547 = vcmp.gt.f32.partialorder %v545, 1.0
    %vm548 = vcmp.gt.f32.partialorder %v546, 1.0
    %v549 = vsel %vm547, 1, 0
    %v550 = vsel %vm548, 1, 0
    %v551 = vcvt.s32.f32 %v549
    %v552 = vcvt.s32.f32 %v550
    %553 = vst [vmem:[#allocation2 + $0x20] sm:$0xff] %v551
    %554 = vst [vmem:[#allocation2 + $0x28] sm:$0xff] %v552
    %v555 = vsub.f32 %v545, 1.0
    %v556 = vsub.f32 %v546, 1.0
    %v557 = vsel %vm547, %v555, %v545
    %v558 = vsel %vm548, %v556, %v546
    %v559 = vmul.f32 %v557, 0.9
    %v560 = vmul.f32 %v558, 0.9
    %v561 = vadd.f32 %v559, %v505
    %v562 = vadd.f32 %v560, %v510
    %vm563 = vcmp.gt.f32.partialorder %v561, 1.0
    %vm564 = vcmp.gt.f32.partialorder %v562, 1.0
    %v565 = vsel %vm563, 1, 0
    %v566 = vsel %vm564, 1, 0
    %v567 = vcvt.s32.f32 %v565
    %v568 = vcvt.s32.f32 %v566
    %569 = vst [vmem:[#allocation2 + $0x30] sm:$0xff] %v567
    %570 = vst [vmem:[#allocation2 + $0x38] sm:$0xff] %v568
    %v571 = vsub.f32 %v561, 1.0
    %v572 = vsub.f32 %v562, 1.0
    %v573 = vsel %vm563, %v571, %v561
    %v574 = vsel %vm564, %v572, %v562
    %v575 = vmul.f32 %v573, 0.9
    %v576 = vmul.f32 %v574, 0.9
    %v577 = vadd.f32 %v575, %v505
    %v578 = vadd.f32 %v576, %v510
    %vm579 = vcmp.gt.f32.partialorder %v577, 1.0
    %vm580 = vcmp.gt.f32.partialorder %v578, 1.0
    %v581 = vsel %vm579, 1, 0
    %v582 = vsel %vm580, 1, 0
    %v583 = vcvt.s32.f32 %v581
    %v584 = vcvt.s32.f32 %v582
    %585 = vst [vmem:[#allocation2 + $0x40] sm:$0xff] %v583
    %586 = vst [vmem:[#allocation2 + $0x48] sm:$0xff] %v584
    %v587 = vsub.f32 %v577, 1.0
    %v588 = vsub.f32 %v578, 1.0
    %v589 = vsel %vm579, %v587, %v577
    %v590 = vsel %vm580, %v588, %v578
    %v591 = vmul.f32 %v589, 0.9
    %v592 = vmul.f32 %v590, 0.9
    %v593 = vadd.f32 %v591, %v505
    %v594 = vadd.f32 %v592, %v510
    %vm595 = vcmp.gt.f32.partialorder %v593, 1.0
    %vm596 = vcmp.gt.f32.partialorder %v594, 1.0
    %v597 = vsel %vm595, 1, 0
    %v598 = vsel %vm596, 1, 0
    %v599 = vcvt.s32.f32 %v597
    %v600 = vcvt.s32.f32 %v598
    %601 = vst [vmem:[#allocation2 + $0x50] sm:$0xff] %v599
    %602 = vst [vmem:[#allocation2 + $0x58] sm:$0xff] %v600
    %v603 = vsub.f32 %v593, 1.0
    %v604 = vsub.f32 %v594, 1.0
    %v605 = vsel %vm595, %v603, %v593
    %v606 = vsel %vm596, %v604, %v594
    %v607 = vmul.f32 %v605, 0.9
    %v608 = vmul.f32 %v606, 0.9
    %v609 = vadd.f32 %v607, %v505
    %v610 = vadd.f32 %v608, %v510
    %vm611 = vcmp.gt.f32.partialorder %v609, 1.0
    %vm612 = vcmp.gt.f32.partialorder %v610, 1.0
    %v613 = vsel %vm611, 1, 0
    %v614 = vsel %vm612, 1, 0
    %v615 = vcvt.s32.f32 %v613
    %v616 = vcvt.s32.f32 %v614
    %617 = vst [vmem:[#allocation2 + $0x60] sm:$0xff] %v615
    %618 = vst [vmem:[#allocation2 + $0x68] sm:$0xff] %v616
    %v619 = vsub.f32 %v609, 1.0
    %v620 = vsub.f32 %v610, 1.0
    %v621 = vsel %vm611, %v619, %v609
    %v622 = vsel %vm612, %v620, %v610
    %v623 = vmul.f32 %v621, 0.9
    %v624 = vmul.f32 %v622, 0.9
    %v625 = vadd.f32 %v623, %v505
    %v626 = vadd.f32 %v624, %v510
    %vm627 = vcmp.gt.f32.partialorder %v625, 1.0
    %vm628 = vcmp.gt.f32.partialorder %v626, 1.0
    %v629 = vsel %vm627, 1, 0
    %v630 = vsel %vm628, 1, 0
    %v631 = vcvt.s32.f32 %v629
    %v632 = vcvt.s32.f32 %v630
    %633 = vst [vmem:[#allocation2 + $0x70] sm:$0xff] %v631
    %634 = vst [vmem:[#allocation2 + $0x78] sm:$0xff] %v632
    %v635 = vld [vmem:[#allocation2] sm:$0xff]
    %v636 = vld [vmem:[#allocation2 + $0x8] sm:$0xff]
    %v637 = vld [vmem:[#allocation2 + $0x10] sm:$0xff]
    %v638 = vld [vmem:[#allocation2 + $0x18] sm:$0xff]
    %v639 = vld [vmem:[#allocation2 + $0x20] sm:$0xff]
    %v640 = vld [vmem:[#allocation2 + $0x28] sm:$0xff]
    %v641 = vld [vmem:[#allocation2 + $0x30] sm:$0xff]
    %v642 = vld [vmem:[#allocation2 + $0x38] sm:$0xff]
    %v643 = vld [vmem:[#allocation2 + $0x40] sm:$0xff]
    %v644 = vld [vmem:[#allocation2 + $0x48] sm:$0xff]
    %v645 = vld [vmem:[#allocation2 + $0x50] sm:$0xff]
    %v646 = vld [vmem:[#allocation2 + $0x58] sm:$0xff]
    %v647 = vld [vmem:[#allocation2 + $0x60] sm:$0xff]
    %v648 = vld [vmem:[#allocation2 + $0x68] sm:$0xff]
    %v649 = vld [vmem:[#allocation2 + $0x70] sm:$0xff]
    %v650 = vld [vmem:[#allocation2 + $0x78] sm:$0xff]
    %v651 = vld [vmem:[#allocation8] sm:$0xff]
    %v652 = vld [vmem:[#allocation8 + $0x8] sm:$0xff]
    %v653 = vld [vmem:[#allocation8 + $0x10] sm:$0xff]
    %v654 = vld [vmem:[#allocation8 + $0x18] sm:$0xff]
    %v655 = vld [vmem:[#allocation8 + $0x20] sm:$0xff]
    %v656 = vld [vmem:[#allocation8 + $0x28] sm:$0xff]
    %v657 = vld [vmem:[#allocation8 + $0x30] sm:$0xff]
    %v658 = vld [vmem:[#allocation8 + $0x38] sm:$0xff]
    %v659 = vld [vmem:[#allocation8 + $0x40] sm:$0xff]
    %v660 = vld [vmem:[#allocation8 + $0x48] sm:$0xff]
    %v661 = vld [vmem:[#allocation8 + $0x50] sm:$0xff]
    %v662 = vld [vmem:[#allocation8 + $0x58] sm:$0xff]
    %v663 = vld [vmem:[#allocation8 + $0x60] sm:$0xff]
    %v664 = vld [vmem:[#allocation8 + $0x68] sm:$0xff]
    %v665 = vld [vmem:[#allocation8 + $0x70] sm:$0xff]
    %v666 = vld [vmem:[#allocation8 + $0x78] sm:$0xff]
    %v667 = vld [vmem:[%s4] sm:$0x1]
    %v669 = vlaneseq
    %v670 = vshrl.u32 %v669, 7
    %v671 = vsub.s32 0, %v670
    %v672 = vrot.slane %v667, %v671
    %674 = vmatprep.subr.mxu0 0.0
    %675 = vmatpush1.msra.mxu0 %v651
    %676 = vmatprep.subr.mxu0 0.0
    %677 = vmatpush1.msra.mxu0 %v652
    %678 = vmatprep.subr.mxu0 0.0
    %679 = vmatpush1.msra.mxu0 %v653
    %680 = vmatprep.subr.mxu0 0.0
    %681 = vmatpush1.msra.mxu0 %v654
    %682 = vmatprep.subr.mxu0 0.0
    %683 = vmatpush1.msra.mxu0 %v655
    %684 = vmatprep.subr.mxu0 0.0
    %685 = vmatpush1.msra.mxu0 %v656
    %686 = vmatprep.subr.mxu0 0.0
    %687 = vmatpush1.msra.mxu0 %v657
    %688 = vmatprep.subr.mxu0 0.0
    %689 = vmatpush1.msra.mxu0 %v658
    %690 = vmatprep.subr.mxu0 0.0
    %691 = vmatpush1.msra.mxu0 %v659
    %692 = vmatprep.subr.mxu0 0.0
    %693 = vmatpush1.msra.mxu0 %v660
    %694 = vmatprep.subr.mxu0 0.0
    %695 = vmatpush1.msra.mxu0 %v661
    %696 = vmatprep.subr.mxu0 0.0
    %697 = vmatpush1.msra.mxu0 %v662
    %698 = vmatprep.subr.mxu0 0.0
    %699 = vmatpush1.msra.mxu0 %v663
    %700 = vmatprep.subr.mxu0 0.0
    %701 = vmatpush1.msra.mxu0 %v664
    %702 = vmatprep.subr.mxu0 0.0
    %703 = vmatpush1.msra.mxu0 %v665
    %704 = vmatprep.subr.mxu0 0.0
    %705 = vmatpush1.msra.mxu0 %v666
    %706 = vmatprep.subr.mxu0 0.0
    %707 = vmatpush1.msra.mxu0 0.0
    %708 = vmatprep.subr.mxu0 0.0
    %709 = vmatpush1.msra.mxu0 0.0
    %710 = vmatprep.subr.mxu0 0.0
    %711 = vmatpush1.msra.mxu0 0.0
    %712 = vmatprep.subr.mxu0 0.0
    %713 = vmatpush1.msra.mxu0 0.0
    %714 = vmatprep.subr.mxu0 0.0
    %715 = vmatpush1.msra.mxu0 0.0
    %716 = vmatprep.subr.mxu0 0.0
    %717 = vmatpush1.msra.mxu0 0.0
    %718 = vmatprep.subr.mxu0 0.0
    %719 = vmatpush1.msra.mxu0 0.0
    %720 = vmatprep.subr.mxu0 0.0
    %721 = vmatpush1.msra.mxu0 0.0
    %722 = vmatprep.subr.mxu0 0.0
    %723 = vmatpush1.msra.mxu0 0.0
    %724 = vmatprep.subr.mxu0 0.0
    %725 = vmatpush1.msra.mxu0 0.0
    %726 = vmatprep.subr.mxu0 0.0
    %727 = vmatpush1.msra.mxu0 0.0
    %728 = vmatprep.subr.mxu0 0.0
    %729 = vmatpush1.msra.mxu0 0.0
    %730 = vmatprep.subr.mxu0 0.0
    %731 = vmatpush1.msra.mxu0 0.0
    %732 = vmatprep.subr.mxu0 0.0
    %733 = vmatpush1.msra.mxu0 0.0
    %734 = vmatprep.subr.mxu0 0.0
    %735 = vmatpush1.msra.mxu0 0.0
    %736 = vmatprep.subr.mxu0 0.0
    %737 = vmatpush1.msra.mxu0 0.0
    %738 = vmatprep.mubr.f32.mxu0 0.0
    %739 = vmatmul.mubr.f32.gmra.mrb[0].mxu0 %v635
    %v740 = vpop.f32.mrb[0].mxu0
    %v741 = vadd.f32 %v672, %v740
    %v742 = vpop.f32.mrb[0].mxu0
    %743 = vmatprep.mubr.f32.mxu0 0.0
    %744 = vmatmul.mubr.f32.gmra.mrb[0].mxu0 %v636
    %v745 = vpop.f32.mrb[0].mxu0
    %v746 = vadd.f32 %v672, %v745
    %v747 = vpop.f32.mrb[0].mxu0
    %748 = vmatprep.mubr.f32.mxu0 0.0
    %749 = vmatmul.mubr.f32.gmra.mrb[0].mxu0 %v637
    %v750 = vpop.f32.mrb[0].mxu0
    %v751 = vadd.f32 %v672, %v750
    %v752 = vpop.f32.mrb[0].mxu0
    %753 = vmatprep.mubr.f32.mxu0 0.0
    %754 = vmatmul.mubr.f32.gmra.mrb[0].mxu0 %v638
    %v755 = vpop.f32.mrb[0].mxu0
    %v756 = vadd.f32 %v672, %v755
    %v757 = vpop.f32.mrb[0].mxu0
    %758 = vmatprep.mubr.f32.mxu0 0.0
    %759 = vmatmul.mubr.f32.gmra.mrb[0].mxu0 %v639
    %v760 = vpop.f32.mrb[0].mxu0
    %v761 = vadd.f32 %v672, %v760
    %v762 = vpop.f32.mrb[0].mxu0
    %763 = vmatprep.mubr.f32.mxu0 0.0
    %764 = vmatmul.mubr.f32.gmra.mrb[0].mxu0 %v640
    %v765 = vpop.f32.mrb[0].mxu0
    %v766 = vadd.f32 %v672, %v765
    %v767 = vpop.f32.mrb[0].mxu0
    %768 = vmatprep.mubr.f32.mxu0 0.0
    %769 = vmatmul.mubr.f32.gmra.mrb[0].mxu0 %v641
    %v770 = vpop.f32.mrb[0].mxu0
    %v771 = vadd.f32 %v672, %v770
    %v772 = vpop.f32.mrb[0].mxu0
    %773 = vmatprep.mubr.f32.mxu0 0.0
    %774 = vmatmul.mubr.f32.gmra.mrb[0].mxu0 %v642
    %v775 = vpop.f32.mrb[0].mxu0
    %v776 = vadd.f32 %v672, %v775
    %v777 = vpop.f32.mrb[0].mxu0
    %778 = vmatprep.mubr.f32.mxu0 0.0
    %779 = vmatmul.mubr.f32.gmra.mrb[0].mxu0 %v643
    %v780 = vpop.f32.mrb[0].mxu0
    %v781 = vadd.f32 %v672, %v780
    %v782 = vpop.f32.mrb[0].mxu0
    %783 = vmatprep.mubr.f32.mxu0 0.0
    %784 = vmatmul.mubr.f32.gmra.mrb[0].mxu0 %v644
    %v785 = vpop.f32.mrb[0].mxu0
    %v786 = vadd.f32 %v672, %v785
    %v787 = vpop.f32.mrb[0].mxu0
    %788 = vmatprep.mubr.f32.mxu0 0.0
    %789 = vmatmul.mubr.f32.gmra.mrb[0].mxu0 %v645
    %v790 = vpop.f32.mrb[0].mxu0
    %v791 = vadd.f32 %v672, %v790
    %v792 = vpop.f32.mrb[0].mxu0
    %793 = vmatprep.mubr.f32.mxu0 0.0
    %794 = vmatmul.mubr.f32.gmra.mrb[0].mxu0 %v646
    %v795 = vpop.f32.mrb[0].mxu0
    %v796 = vadd.f32 %v672, %v795
    %v797 = vpop.f32.mrb[0].mxu0
    %798 = vmatprep.mubr.f32.mxu0 0.0
    %799 = vmatmul.mubr.f32.gmra.mrb[0].mxu0 %v647
    %v800 = vpop.f32.mrb[0].mxu0
    %v801 = vadd.f32 %v672, %v800
    %v802 = vpop.f32.mrb[0].mxu0
    %803 = vmatprep.mubr.f32.mxu0 0.0
    %804 = vmatmul.mubr.f32.gmra.mrb[0].mxu0 %v648
    %v805 = vpop.f32.mrb[0].mxu0
    %v806 = vadd.f32 %v672, %v805
    %v807 = vpop.f32.mrb[0].mxu0
    %808 = vmatprep.mubr.f32.mxu0 0.0
    %809 = vmatmul.mubr.f32.gmra.mrb[0].mxu0 %v649
    %v810 = vpop.f32.mrb[0].mxu0
    %v811 = vadd.f32 %v672, %v810
    %v812 = vpop.f32.mrb[0].mxu0
    %813 = vmatprep.mubr.f32.mxu0 0.0
    %814 = vmatmul.mubr.f32.gmra.mrb[0].mxu0 %v650
    %v815 = vpop.f32.mrb[0].mxu0
    %v816 = vadd.f32 %v672, %v815
    %v817 = vpop.f32.mrb[0].mxu0
    %818 = vdwg.mxu0
    %v819 = vadd.f32 %v741, 0.0
    %v820 = vadd.f32 %v746, 0.0
    %vm821 = vcmp.gt.f32.partialorder %v819, 1.0
    %vm822 = vcmp.gt.f32.partialorder %v820, 1.0
    %v823 = vsub.f32 %v819, 1.0
    %v824 = vsub.f32 %v820, 1.0
    %v825 = vsel %vm821, %v823, %v819
    %v826 = vsel %vm822, %v824, %v820
    %v827 = vsel %vm821, 1, 0
    %v828 = vsel %vm822, 1, 0
    %v829 = vcvt.s32.f32 %v827
    %v830 = vcvt.s32.f32 %v828
    %v831 = vadd.f32 %v829, 0.0
    %v832 = vadd.f32 %v830, 0.0
    %v833 = vmul.f32 %v825, 0.9
    %v834 = vmul.f32 %v826, 0.9
    %v835 = vadd.f32 %v833, %v751
    %v836 = vadd.f32 %v834, %v756
    %vm837 = vcmp.gt.f32.partialorder %v835, 1.0
    %vm838 = vcmp.gt.f32.partialorder %v836, 1.0
    %v839 = vsub.f32 %v835, 1.0
    %v840 = vsub.f32 %v836, 1.0
    %v841 = vsel %vm837, %v839, %v835
    %v842 = vsel %vm838, %v840, %v836
    %v843 = vsel %vm837, 1, 0
    %v844 = vsel %vm838, 1, 0
    %v845 = vcvt.s32.f32 %v843
    %v846 = vcvt.s32.f32 %v844
    %v847 = vadd.f32 %v831, %v845
    %v848 = vadd.f32 %v832, %v846
    %v849 = vmul.f32 %v841, 0.9
    %v850 = vmul.f32 %v842, 0.9
    %v851 = vadd.f32 %v849, %v761
    %v852 = vadd.f32 %v850, %v766
    %vm853 = vcmp.gt.f32.partialorder %v851, 1.0
    %vm854 = vcmp.gt.f32.partialorder %v852, 1.0
    %v855 = vsub.f32 %v851, 1.0
    %v856 = vsub.f32 %v852, 1.0
    %v857 = vsel %vm853, %v855, %v851
    %v858 = vsel %vm854, %v856, %v852
    %v859 = vsel %vm853, 1, 0
    %v860 = vsel %vm854, 1, 0
    %v861 = vcvt.s32.f32 %v859
    %v862 = vcvt.s32.f32 %v860
    %v863 = vadd.f32 %v847, %v861
    %v864 = vadd.f32 %v848, %v862
    %v865 = vmul.f32 %v857, 0.9
    %v866 = vmul.f32 %v858, 0.9
    %v867 = vadd.f32 %v865, %v771
    %v868 = vadd.f32 %v866, %v776
    %vm869 = vcmp.gt.f32.partialorder %v867, 1.0
    %vm870 = vcmp.gt.f32.partialorder %v868, 1.0
    %v871 = vsub.f32 %v867, 1.0
    %v872 = vsub.f32 %v868, 1.0
    %v873 = vsel %vm869, %v871, %v867
    %v874 = vsel %vm870, %v872, %v868
    %v875 = vsel %vm869, 1, 0
    %v876 = vsel %vm870, 1, 0
    %v877 = vcvt.s32.f32 %v875
    %v878 = vcvt.s32.f32 %v876
    %v879 = vadd.f32 %v863, %v877
    %v880 = vadd.f32 %v864, %v878
    %v881 = vmul.f32 %v873, 0.9
    %v882 = vmul.f32 %v874, 0.9
    %v883 = vadd.f32 %v881, %v781
    %v884 = vadd.f32 %v882, %v786
    %vm885 = vcmp.gt.f32.partialorder %v883, 1.0
    %vm886 = vcmp.gt.f32.partialorder %v884, 1.0
    %v887 = vsub.f32 %v883, 1.0
    %v888 = vsub.f32 %v884, 1.0
    %v889 = vsel %vm885, %v887, %v883
    %v890 = vsel %vm886, %v888, %v884
    %v891 = vsel %vm885, 1, 0
    %v892 = vsel %vm886, 1, 0
    %v893 = vcvt.s32.f32 %v891
    %v894 = vcvt.s32.f32 %v892
    %v895 = vadd.f32 %v879, %v893
    %v896 = vadd.f32 %v880, %v894
    %v897 = vmul.f32 %v889, 0.9
    %v898 = vmul.f32 %v890, 0.9
    %v899 = vadd.f32 %v897, %v791
    %v900 = vadd.f32 %v898, %v796
    %vm901 = vcmp.gt.f32.partialorder %v899, 1.0
    %vm902 = vcmp.gt.f32.partialorder %v900, 1.0
    %v903 = vsub.f32 %v899, 1.0
    %v904 = vsub.f32 %v900, 1.0
    %v905 = vsel %vm901, %v903, %v899
    %v906 = vsel %vm902, %v904, %v900
    %v907 = vsel %vm901, 1, 0
    %v908 = vsel %vm902, 1, 0
    %v909 = vcvt.s32.f32 %v907
    %v910 = vcvt.s32.f32 %v908
    %v911 = vadd.f32 %v895, %v909
    %v912 = vadd.f32 %v896, %v910
    %v913 = vmul.f32 %v905, 0.9
    %v914 = vmul.f32 %v906, 0.9
    %v915 = vadd.f32 %v913, %v801
    %v916 = vadd.f32 %v914, %v806
    %vm917 = vcmp.gt.f32.partialorder %v915, 1.0
    %vm918 = vcmp.gt.f32.partialorder %v916, 1.0
    %v919 = vsub.f32 %v915, 1.0
    %v920 = vsub.f32 %v916, 1.0
    %v921 = vsel %vm917, %v919, %v915
    %v922 = vsel %vm918, %v920, %v916
    %v923 = vsel %vm917, 1, 0
    %v924 = vsel %vm918, 1, 0
    %v925 = vcvt.s32.f32 %v923
    %v926 = vcvt.s32.f32 %v924
    %v927 = vadd.f32 %v911, %v925
    %v928 = vadd.f32 %v912, %v926
    %v929 = vmul.f32 %v921, 0.9
    %v930 = vmul.f32 %v922, 0.9
    %v931 = vadd.f32 %v929, %v811
    %v932 = vadd.f32 %v930, %v816
    %vm933 = vcmp.gt.f32.partialorder %v931, 1.0
    %vm934 = vcmp.gt.f32.partialorder %v932, 1.0
    %v935 = vsel %vm933, 1, 0
    %v936 = vsel %vm934, 1, 0
    %v937 = vcvt.s32.f32 %v935
    %v938 = vcvt.s32.f32 %v936
    %v939 = vadd.f32 %v927, %v937
    %v940 = vadd.f32 %v928, %v938
    %941 = vst [vmem:[#allocation9] sm:$0xff] %v939
    %942 = vst [vmem:[#allocation9 + $0x8] sm:$0xff] %v940
    // Predicated region
    $region34: #{tpu_custom_call.1} parent=1 // pred_check
      _
    $region35: #{tpu_custom_call.1} parent=1 // pred_check_branch
      %944 = sbr.rel (0) target = $region37
    $region36: #{tpu_custom_call.1} parent=1 // pred_region
      %s946 = ssub.s32 256, 256
      %947 = vsyncadd [#allocation5], %s946
      %s948 = sshll.u32 [#allocation9], 4
      %s949 = int_to_ptr.vmem [resolvable:$true] %s948
      %954 = dma.vmem_to_hbm [thread:$0]  %s949, 256, %s5, [#allocation5], 128, 128, 8
    $region37: #{tpu_custom_call.1} parent=1 // pred_fallthru
      _
    // Predicated region
    $region38: #{tpu_custom_call.1} parent=1 // pred_check
      _
    $region39: #{tpu_custom_call.1} parent=1 // pred_check_branch
      %956 = sbr.rel (0) target = $region41
    $region40: #{tpu_custom_call.1} parent=1 // pred_region
      %957 = dma.done [#allocation5], 256
    $region41: #{tpu_custom_call.1} parent=1 // pred_fallthru
      _
    %958 = vsyncpa [#allocation4], 1
    %959 = vsyncpa [#allocation7], 1
    %960 = vsyncpa [#allocation5], 1

</llo_original>
